<compile_context>
chip_gen: v7x
topology: tpu7x:2x2x1
jax: 0.10.0
libtpu: 0.0.40
codegen_flags: <defaults>
</compile_context>

<pallas_src>
import functools

import jax
import jax.numpy as jnp
from jax import lax
from jax.experimental import pallas as pl
from jax.experimental.pallas import tpu as pltpu

EPS = 1e-12


def _round_up(x, m):
    return (x + m - 1) // m * m


# ---------------------------------------------------------------------------
# Power iteration + sigma: tiny (Cout, Cin*kh*kw) problem -> plain JAX.
# ---------------------------------------------------------------------------
def _l2normalize(x, eps=EPS):
    return x / (jnp.linalg.norm(x) + eps)


def power_iteration(w_mat, u, v, power_iterations=1):
    for _ in range(power_iterations):
        v = _l2normalize(w_mat.T @ u)
        u = _l2normalize(w_mat @ v)
    sigma = jnp.dot(u, w_mat @ v)
    return u, v, sigma


# ---------------------------------------------------------------------------
# Fused conv kernel.  Per (image, Cout-tile):
#   out[co, h*Wp + w] = (1/sigma) * sum_{di,dj,ci} w[co,ci,di,dj] *
#                       x_pad[ci, h+di, w+dj]  + bias[co]
# The width-padded flat layout keeps every tap (di, dj) a contiguous static
# lane slice of the flat padded image.
# ---------------------------------------------------------------------------
def _sn_conv_kernel(kh, kw, Wp, Lout, fold_taps,
                    sigma_ref, x_ref, w_ref, b_ref, out_ref):
    # x_ref  : (Cin_p, Lflat)   flat padded image (lane-contiguous), compute dtype
    # w_ref  : folded  -> (co_tile, kh*kw*Cin_p)
    #          per-tap -> (kh*kw, co_tile, Cin_p)
    # b_ref  : (co_tile, 1) f32
    # out_ref: (co_tile, Lout)  Lout = round_up(Ho*Wp, 128)  (lane-dense)
    inv_sigma = 1.0 / sigma_ref[0, 0]

    if fold_taps:
        # One MXU contraction with K = kh*kw*Cin_p (fills MXU depth even for
        # small Cin).  Cin_p is padded to the sublane packing in the wrapper,
        # so the sublane-axis concat of the 9 tap slices is tile-aligned.
        patches = jnp.concatenate(
            [x_ref[:, di * Wp + dj: di * Wp + dj + Lout]
             for di in range(kh) for dj in range(kw)], axis=0)
        acc = jnp.dot(w_ref[...], patches, preferred_element_type=jnp.float32)
    else:
        # Per-tap scheme (large Cin): 9 Cin-deep matmuls, no stacked patches.
        co = w_ref.shape[1]
        acc = jnp.zeros((co, Lout), jnp.float32)
        for di in range(kh):                      # static unrolled taps
            for dj in range(kw):
                start = di * Wp + dj              # static lane offset
                acc = acc + jnp.dot(w_ref[di * kw + dj],
                                    x_ref[:, start:start + Lout],
                                    preferred_element_type=jnp.float32)

    # f32 epilogue: 1/sigma scaling + bias, unmasked lane-dense store.
    out_ref[...] = acc * inv_sigma + b_ref[...]


def _spectral_norm_conv_forward(x, w_bar, bias, u, v, *, stride=1, pad=1,
                                power_iterations=1,
                                compute_dtype=jnp.bfloat16,
                                fold_taps=None):
    Cout, Cin, kh, kw = w_bar.shape
    assert stride == 1, "fused SpectralNorm conv kernel supports stride=1"

    # ---- spectral norm scalar (plain JAX; tiny) ----
    w_mat = w_bar.reshape(Cout, Cin * kh * kw)
    u_new, v_new, sigma = power_iteration(w_mat, u, v, power_iterations)

    # ---- geometry ----
    N, _, H, W = x.shape
    Hp, Wp = H + 2 * pad, W + 2 * pad
    Ho, Wo = Hp - kh + 1, Wp - kw + 1
    Lout = _round_up(Ho * Wp, 128)          # lane-aligned flat output length
    # Flat input length so every (di, dj) tap slice of width Lout is in
    # bounds; realized by padding whole zero rows below the image.
    need = (kh - 1) * Wp + (kw - 1) + Lout
    extra_rows = -(-(need - Hp * Wp) // Wp) if need > Hp * Wp else 0
    Lflat = (Hp + extra_rows) * Wp

    # ---- static scheme selection ----
    if fold_taps is None:
        fold_taps = Cin < 256               # v5e: folding pays off up to ~128
    co_tile = 128 if (Cout > 128 and Cout % 128 == 0) else Cout
    n_co = Cout // co_tile
    # sublane packing of the compute dtype (8 for f32, 16 for bf16) so the
    # in-kernel concat along the contraction axis is tile-aligned
    pack = 8 * (4 // jnp.dtype(compute_dtype).itemsize)
    Cin_p = _round_up(Cin, pack) if fold_taps else Cin

    # ---- single pad pass: conv halo + tail rows + Cin zero-pad ----
    xf = jnp.pad(x, ((0, 0), (0, Cin_p - Cin),
                     (pad, pad + extra_rows), (pad, pad)))
    xf = xf.reshape(N, Cin_p, Lflat).astype(compute_dtype)

    # ---- weights / bias / sigma ----
    if fold_taps:
        w_k = jnp.pad(w_bar, ((0, 0), (0, Cin_p - Cin), (0, 0), (0, 0)))
        # (Cout, kh, kw, Cin_p) -> (Cout, kh*kw*Cin_p), tap-major = concat order
        w_k = w_k.transpose(0, 2, 3, 1).reshape(Cout, kh * kw * Cin_p)
        w_spec = pl.BlockSpec((co_tile, kh * kw * Cin_p), lambda n, c: (c, 0))
    else:
        w_k = w_bar.transpose(2, 3, 0, 1).reshape(kh * kw, Cout, Cin)
        w_spec = pl.BlockSpec((kh * kw, co_tile, Cin), lambda n, c: (0, c, 0))
    w_k = w_k.astype(compute_dtype)
    bias2 = bias.reshape(Cout, 1).astype(jnp.float32)
    sigma_smem = sigma.reshape(1, 1).astype(jnp.float32)

    kern = functools.partial(_sn_conv_kernel, kh, kw, Wp, Lout, fold_taps)
    out_flat = pl.pallas_call(
        kern,
        out_shape=jax.ShapeDtypeStruct((N, Cout, Lout), jnp.float32),
        grid=(N, n_co),
        in_specs=[
            pl.BlockSpec(memory_space=pltpu.MemorySpace.SMEM),           # sigma (1,1)
            # image slab: index independent of the (innermost) Cout axis ->
            # revisited, not re-DMA'd, across Cout tiles
            pl.BlockSpec((None, Cin_p, Lflat), lambda n, c: (n, 0, 0)),
            w_spec,                                                      # weights
            pl.BlockSpec((co_tile, 1), lambda n, c: (c, 0)),             # bias
        ],
        out_specs=pl.BlockSpec((None, co_tile, Lout), lambda n, c: (n, c, 0)),
        compiler_params=pltpu.CompilerParams(
            dimension_semantics=("parallel", "parallel"),
            # explicit scoped-VMEM budget (raise deliberately for production
            # SAGAN shapes; toy working set is tiny)
            vmem_limit_bytes=64 * 1024 * 1024),
    )(sigma_smem, xf, w_k, bias2)

    # Drop the lane-alignment pad + (kw-1) wrap columns per row (no transpose).
    # TODO(synk): skip this crop if the consumer can read the padded layout.
    y = out_flat[:, :, :Ho * Wp].reshape(N, Cout, Ho, Wp)[:, :, :, :Wo]
    return y, u_new, v_new, sigma


spectral_norm_conv_forward = jax.jit(
    _spectral_norm_conv_forward,
    static_argnames=("stride", "pad", "power_iterations",
                     "compute_dtype", "fold_taps"))


# ---------------------------------------------------------------------------
# Pure-JAX reference (correctness sanity check)
# ---------------------------------------------------------------------------
def reference_forward(x, w_bar, bias, u, v):
    Cout = w_bar.shape[0]
    w_mat = w_bar.reshape(Cout, -1)
    v1 = _l2normalize(w_mat.T @ u)
    u1 = _l2normalize(w_mat @ v1)
    sigma = u1 @ (w_mat @ v1)
    w = w_bar / sigma
    y = lax.conv_general_dilated(x, w, (1, 1), [(1, 1), (1, 1)],
                                 dimension_numbers=('NCHW', 'OIHW', 'NCHW'))
    return y + bias.reshape(1, -1, 1, 1)


if __name__ == "__main__":
    key = jax.random.PRNGKey(0)
    k_x, k_w, k_b, k_u, k_v = jax.random.split(key, 5)

    # SpectralNorm(nn.Conv2d(4, 8, kernel_size=3, stride=1, padding=1))
    N, Cin, Hs, Ws = 2, 4, 16, 16
    Cout, kh, kw = 8, 3, 3

    x = jax.random.normal(k_x, (N, Cin, Hs, Ws), jnp.float32)
    w_bar = jax.random.normal(k_w, (Cout, Cin, kh, kw), jnp.float32) * 0.1
    bias = jax.random.normal(k_b, (Cout,), jnp.float32) * 0.1

    width = Cin * kh * kw
    u0 = jax.random.normal(k_u, (Cout,), jnp.float32)
    v0 = jax.random.normal(k_v, (width,), jnp.float32)
    u0 = u0 / (jnp.linalg.norm(u0) + EPS)
    v0 = v0 / (jnp.linalg.norm(v0) + EPS)

    y_ref = reference_forward(x, w_bar, bias, u0, v0)

    # f32 compute paths: strict check of both the folded and per-tap schemes.
    for ft in (True, False):
        y, u_new, v_new, sigma = spectral_norm_conv_forward(
            x, w_bar, bias, u0, v0, stride=1, pad=1, power_iterations=1,
            compute_dtype=jnp.float32, fold_taps=ft)
        jax.block_until_ready(y)
        max_err = float(jnp.max(jnp.abs(y - y_ref)))
        assert jnp.allclose(y, y_ref, atol=1e-4, rtol=1e-4), (ft, max_err)

    # bf16 MXU path (production default): looser tolerance vs. f32 reference.
    y_bf16, _, _, _ = spectral_norm_conv_forward(
        x, w_bar, bias, u0, v0, stride=1, pad=1, power_iterations=1,
        compute_dtype=jnp.bfloat16)
    jax.block_until_ready(y_bf16)
    max_err_bf16 = float(jnp.max(jnp.abs(y_bf16 - y_ref)))
    assert jnp.allclose(y_bf16, y_ref, atol=5e-2, rtol=5e-2), max_err_bf16

    print("KERNEL_OK")
</pallas_src>

<mosaic_0001>
module attributes {stable_mosaic.version = 11 : i64} {
  func.func @_sn_conv_kernel(%arg0: i32, %arg1: i32, %arg2: memref<1x1xf32, #tpu.memory_space<smem>>, %arg3: memref<1x8x432xf32, #tpu.memory_space<vmem>>, %arg4: memref<8x72xf32, #tpu.memory_space<vmem>>, %arg5: memref<8x1xf32, #tpu.memory_space<vmem>>, %arg6: memref<1x8x384xf32, #tpu.memory_space<vmem>>) attributes {dimension_semantics = [#tpu.dimension_semantics<parallel>, #tpu.dimension_semantics<parallel>], iteration_bounds = array<i64: 2, 1>, scalar_prefetch = 0 : i64, scratch_operands = 0 : i64, tpu.core_type = #tpu.core_type<tc>, window_params = [{transform_indices = @transform_0, window_bounds = array<i64: 1, 1>}, {transform_indices = @transform_1, window_bounds = array<i64: 1, 8, 432>}, {transform_indices = @transform_2, window_bounds = array<i64: 8, 72>}, {transform_indices = @transform_3, window_bounds = array<i64: 8, 1>}, {transform_indices = @transform_4, window_bounds = array<i64: 1, 8, 384>}]} {
    %c0 = arith.constant 0 : index
    %c0_0 = arith.constant 0 : index
    %0 = memref.load %arg2[%c0, %c0_0] : memref<1x1xf32, #tpu.memory_space<smem>>
    %cst = arith.constant 1.000000e+00 : f32
    %1 = arith.divf %cst, %0 : f32
    %c0_1 = arith.constant 0 : index
    %c0_2 = arith.constant 0 : index
    %c0_3 = arith.constant 0 : index
    %2 = vector.load %arg3[%c0_1, %c0_2, %c0_3] : memref<1x8x432xf32, #tpu.memory_space<vmem>>, vector<1x8x384xf32>
    %3 = vector.shape_cast %2 : vector<1x8x384xf32> to vector<8x384xf32>
    %c0_4 = arith.constant 0 : index
    %c0_5 = arith.constant 0 : index
    %c1 = arith.constant 1 : index
    %4 = vector.load %arg3[%c0_4, %c0_5, %c1] : memref<1x8x432xf32, #tpu.memory_space<vmem>>, vector<1x8x384xf32>
    %5 = vector.shape_cast %4 : vector<1x8x384xf32> to vector<8x384xf32>
    %c0_6 = arith.constant 0 : index
    %c0_7 = arith.constant 0 : index
    %c2 = arith.constant 2 : index
    %6 = vector.load %arg3[%c0_6, %c0_7, %c2] : memref<1x8x432xf32, #tpu.memory_space<vmem>>, vector<1x8x384xf32>
    %7 = vector.shape_cast %6 : vector<1x8x384xf32> to vector<8x384xf32>
    %c0_8 = arith.constant 0 : index
    %c0_9 = arith.constant 0 : index
    %c18 = arith.constant 18 : index
    %8 = vector.load %arg3[%c0_8, %c0_9, %c18] : memref<1x8x432xf32, #tpu.memory_space<vmem>>, vector<1x8x384xf32>
    %9 = vector.shape_cast %8 : vector<1x8x384xf32> to vector<8x384xf32>
    %c0_10 = arith.constant 0 : index
    %c0_11 = arith.constant 0 : index
    %c19 = arith.constant 19 : index
    %10 = vector.load %arg3[%c0_10, %c0_11, %c19] : memref<1x8x432xf32, #tpu.memory_space<vmem>>, vector<1x8x384xf32>
    %11 = vector.shape_cast %10 : vector<1x8x384xf32> to vector<8x384xf32>
    %c0_12 = arith.constant 0 : index
    %c0_13 = arith.constant 0 : index
    %c20 = arith.constant 20 : index
    %12 = vector.load %arg3[%c0_12, %c0_13, %c20] : memref<1x8x432xf32, #tpu.memory_space<vmem>>, vector<1x8x384xf32>
    %13 = vector.shape_cast %12 : vector<1x8x384xf32> to vector<8x384xf32>
    %c0_14 = arith.constant 0 : index
    %c0_15 = arith.constant 0 : index
    %c36 = arith.constant 36 : index
    %14 = vector.load %arg3[%c0_14, %c0_15, %c36] : memref<1x8x432xf32, #tpu.memory_space<vmem>>, vector<1x8x384xf32>
    %15 = vector.shape_cast %14 : vector<1x8x384xf32> to vector<8x384xf32>
    %c0_16 = arith.constant 0 : index
    %c0_17 = arith.constant 0 : index
    %c37 = arith.constant 37 : index
    %16 = vector.load %arg3[%c0_16, %c0_17, %c37] : memref<1x8x432xf32, #tpu.memory_space<vmem>>, vector<1x8x384xf32>
    %17 = vector.shape_cast %16 : vector<1x8x384xf32> to vector<8x384xf32>
    %c0_18 = arith.constant 0 : index
    %c0_19 = arith.constant 0 : index
    %c38 = arith.constant 38 : index
    %18 = vector.load %arg3[%c0_18, %c0_19, %c38] : memref<1x8x432xf32, #tpu.memory_space<vmem>>, vector<1x8x384xf32>
    %19 = vector.shape_cast %18 : vector<1x8x384xf32> to vector<8x384xf32>
    %20 = tpu.concatenate %3, %5, %7, %9, %11, %13, %15, %17, %19 in 0 : vector<8x384xf32>, vector<8x384xf32>, vector<8x384xf32>, vector<8x384xf32>, vector<8x384xf32>, vector<8x384xf32>, vector<8x384xf32>, vector<8x384xf32>, vector<8x384xf32> -> vector<72x384xf32>
    %c0_20 = arith.constant 0 : index
    %c0_21 = arith.constant 0 : index
    %21 = vector.load %arg4[%c0_20, %c0_21] : memref<8x72xf32, #tpu.memory_space<vmem>>, vector<8x72xf32>
    %cst_22 = arith.constant dense<0.000000e+00> : vector<8x384xf32>
    %22 = tpu.matmul %21, %20, %cst_22 {dimension_numbers = #tpu.dot_dimension_numbers<[1], [0], [0], [1], [0, 0, 1, 1], [], []>} : vector<8x72xf32>, vector<72x384xf32>, vector<8x384xf32> -> vector<8x384xf32>
    %23 = vector.broadcast %1 : f32 to vector<8x384xf32>
    %24 = arith.mulf %22, %23 : vector<8x384xf32>
    %c0_23 = arith.constant 0 : index
    %c0_24 = arith.constant 0 : index
    %25 = vector.load %arg5[%c0_23, %c0_24] : memref<8x1xf32, #tpu.memory_space<vmem>>, vector<8x1xf32>
    %26 = vector.broadcast %25 : vector<8x1xf32> to vector<8x384xf32>
    %27 = arith.addf %24, %26 : vector<8x384xf32>
    %c0_25 = arith.constant 0 : index
    %c0_26 = arith.constant 0 : index
    %c0_27 = arith.constant 0 : index
    %28 = vector.load %arg6[%c0_25, %c0_26, %c0_27] : memref<1x8x384xf32, #tpu.memory_space<vmem>>, vector<1x8x384xf32>
    %29 = vector.shape_cast %28 : vector<1x8x384xf32> to vector<8x384xf32>
    %30 = vector.shape_cast %27 : vector<8x384xf32> to vector<1x8x384xf32>
    tpu.vector_store %arg6[%c0_25, %c0_26, %c0_27], %30 {strides = array<i32>} : memref<1x8x384xf32, #tpu.memory_space<vmem>>, vector<1x8x384xf32>,
    return
  }
  func.func @transform_0(%arg0: i32, %arg1: i32) -> (i32, i32) {
    %c0_i32 = arith.constant 0 : i32
    %c0_i32_0 = arith.constant 0 : i32
    %c0_i32_1 = arith.constant 0 : i32
    return %c0_i32, %c0_i32_0 : i32, i32
  }
  func.func @transform_1(%arg0: i32, %arg1: i32) -> (i32, i32, i32) {
    %c0_i32 = arith.constant 0 : i32
    %c0_i32_0 = arith.constant 0 : i32
    %c0_i32_1 = arith.constant 0 : i32
    return %arg0, %c0_i32, %c0_i32_0 : i32, i32, i32
  }
  func.func @transform_2(%arg0: i32, %arg1: i32) -> (i32, i32) {
    %c0_i32 = arith.constant 0 : i32
    %c0_i32_0 = arith.constant 0 : i32
    return %arg1, %c0_i32 : i32, i32
  }
  func.func @transform_3(%arg0: i32, %arg1: i32) -> (i32, i32) {
    %c0_i32 = arith.constant 0 : i32
    %c0_i32_0 = arith.constant 0 : i32
    return %arg1, %c0_i32 : i32, i32
  }
  func.func @transform_4(%arg0: i32, %arg1: i32) -> (i32, i32, i32) {
    %c0_i32 = arith.constant 0 : i32
    %c0_i32_0 = arith.constant 0 : i32
    return %arg0, %arg1, %c0_i32 : i32, i32, i32
  }
}

</mosaic_0001>

<llo_original>
// kernel: _spectral_norm_conv_forward.1
$region0: #{_spectral_norm_conv_forward.1}
  #allocation0 [shape = 'u32[]', space=smem, size = 0x4, offset = 0x4, fixed_abs, tag = 'smem constant byte address 0x4 - core index']
  #allocation1 [shape = 'u32[144,128]{1,0:T(1,128)}', space=vmem, size = 0x12000, scoped, tag = 'internal scratch']
  #allocation2 [shape = 'f32[1,1]{1,0:T(1,128)S(6)}', space=smem, size = 0x200, scoped, tag = 'scoped memory for _spectral_norm_conv_forward.1']
  %s0 = inlined_call_operand.<no memory space> [shape: f32[1,1], index: 0, kind: input, shape index: {}]
  %s1 = inlined_call_operand.hbm [shape: f32[2,8,432], index: 1, kind: input, shape index: {}]
  %s2 = inlined_call_operand.hbm [shape: f32[8,72], index: 2, kind: input, shape index: {}]
  %s3 = inlined_call_operand.hbm [shape: f32[8,1], index: 3, kind: input, shape index: {}]
  %s4 = inlined_call_operand.hbm [shape: f32[2,8,384], index: 4, kind: output, shape index: {}]
  %s5 = sld [smem:[#allocation0]]
  $region61: #{_spectral_norm_conv_forward.1} parent=0
    _
  %s7 = ssub.s32 1, %s5
  %s8 = scalar_select 0, %s7, %s5
  %9 = sst [smem:[#allocation2]] %s0
  $region1: #{_spectral_norm_conv_forward.1} parent=0
    #allocation3 [shape = 'u8[32768]{0}', space=vmem, size = 0x8000, scoped, tag = 'input window, operand 1']
    #allocation4 [shape = 's32[2]{0}', space=sflag, size = 0x8, scoped, tag = 'scoped memory for _spectral_norm_conv_forward.1']
    #allocation5 [shape = 's32[2]{0}', space=sflag, size = 0x8, scoped, tag = 'scoped memory for _spectral_norm_conv_forward.1']
    #allocation6 [shape = 'u8[4096]{0}', space=vmem, size = 0x1000, scoped, tag = 'input window, operand 2, single buffered']
    #allocation7 [shape = 's32[1]{0}', space=sflag, size = 0x4, scoped, tag = 'scoped memory for _spectral_norm_conv_forward.1']
    #allocation8 [shape = 'u8[4096]{0}', space=vmem, size = 0x1000, scoped, tag = 'input window, operand 3, single buffered']
    #allocation9 [shape = 'u8[24576]{0}', space=vmem, size = 0x6000, scoped, tag = 'output window, operand 0']
    %10 = vsyncpa [#allocation4], 0
    %s11 = scalar_lea.sflag [#allocation4], 1
    %12 = vsyncpa %s11, 0
    %13 = vsyncpa [#allocation7], 0
    %14 = vsyncpa [#allocation5], 0
    %s15 = scalar_lea.sflag [#allocation5], 1
    %16 = vsyncpa %s15, 0
    loop: start=0, step=1, limit=4
    $region2: #{_spectral_norm_conv_forward.1} parent=1 // loop_pre_header
      _
    $region3: #{_spectral_norm_conv_forward.1} parent=1 // loop_header
      %s18 = sphi 0, %s22
      %p19 = scmp.ge.s32.totalorder %s18, 4
      %s25 = sphi 0, %s37
      %s26 = sphi 0, %s33
      %s27 = sphi 0, %s25
      %s28 = sphi 0, %s26
      %s29 = sphi 0, %s27
      %s30 = sphi 0, %s28
      %s38 = sphi 0, %s38
      %s40 = sphi 0, %s38
      %s41 = sphi 0, %s40
      %s55 = sphi 0, %s41
      %s61 = sphi 0, %s63
      %s64 = sphi 0, %s61
      %s65 = sphi 0, %s64
      %s81 = sphi 0, %s65
      %s87 = sphi 0, %s89
      %s90 = sphi 0, %s87
      %s91 = sphi 0, %s90
      %s107 = sphi 0, %s91
      %s113 = sphi 0, %s115
      %s116 = sphi 0, %s113
      %s117 = sphi 0, %s116
      %s133 = sphi 0, %s117
      %s141 = sphi 0, %s143
      %s144 = sphi 0, %s141
      %s145 = sphi 0, %s144
      %s161 = sphi 0, %s145
    $region4: #{_spectral_norm_conv_forward.1} parent=1 // loop_header_branch
      %21 = sbr.rel (%p19) target = $region8
    $region5: #{_spectral_norm_conv_forward.1} parent=1 // loop_body
      %s23 = ssub.s32 %s18, 1
      %s24 = ssub.s32 %s18, 2
      %s31 = sadd.s32 1, %s26
      %p32 = scmp.ge.s32.totalorder %s31, 1
      %s33 = scalar_select %p32, 0, %s31
      %s34 = sadd.s32 1, %s25
      %s35 = scalar_select %p32, %s34, %s25
      %p36 = scmp.ge.s32.totalorder %s35, 2
      %s37 = scalar_select %p36, 0, %s35
      %s39 = sadd.s32 %s38, 1
      %p42 = scmp.eq.s32.totalorder %s18, 1
      %p43 = scmp.ne.s32.totalorder %s38, %s40
      %p44 = scmp.eq.s32.totalorder %s18, 0
      %p45 = por %p43, %p44
      %p46 = scmp.ne.s32.totalorder %s38, %s40
      %p47 = scmp.eq.s32.totalorder %s23, 1
      %p48 = por %p46, %p47
      %p49 = scmp.ne.s32.totalorder %s40, %s41
      %p50 = scmp.eq.s32.totalorder %s23, 0
      %p51 = por %p49, %p50
      %p52 = scmp.ne.s32.totalorder %s40, %s41
      %p53 = scmp.eq.s32.totalorder %s24, 1
      %p54 = por %p52, %p53
      %p56 = scmp.ne.s32.totalorder %s41, %s55
      %p57 = scmp.eq.s32.totalorder %s24, 0
      %p58 = por %p56, %p57
      %s59 = ssub.s32 %s25, %s37
      %p60 = scmp.eq.s32.totalorder %s59, 0
      %s62 = sadd.s32 %s61, 1
      %s63 = scalar_select %p60, %s61, %s62
      %p66 = pneg %p60
      %p67 = scmp.eq.s32.totalorder %s18, 1
      %p68 = por %p66, %p67
      %p69 = scmp.ne.s32.totalorder %s61, %s64
      %p70 = scmp.eq.s32.totalorder %s18, 0
      %p71 = por %p69, %p70
      %p72 = scmp.ne.s32.totalorder %s61, %s64
      %p73 = scmp.eq.s32.totalorder %s23, 1
      %p74 = por %p72, %p73
      %p75 = scmp.ne.s32.totalorder %s64, %s65
      %p76 = scmp.eq.s32.totalorder %s23, 0
      %p77 = por %p75, %p76
      %p78 = scmp.ne.s32.totalorder %s64, %s65
      %p79 = scmp.eq.s32.totalorder %s24, 1
      %p80 = por %p78, %p79
      %p82 = scmp.ne.s32.totalorder %s65, %s81
      %p83 = scmp.eq.s32.totalorder %s24, 0
      %p84 = por %p82, %p83
      %s85 = ssub.s32 %s26, %s33
      %p86 = scmp.eq.s32.totalorder %s85, 0
      %s88 = sadd.s32 %s87, 1
      %s89 = scalar_select %p86, %s87, %s88
      %p92 = pneg %p86
      %p93 = scmp.eq.s32.totalorder %s18, 1
      %p94 = por %p92, %p93
      %p95 = scmp.ne.s32.totalorder %s87, %s90
      %p96 = scmp.eq.s32.totalorder %s18, 0
      %p97 = por %p95, %p96
      %p98 = scmp.ne.s32.totalorder %s87, %s90
      %p99 = scmp.eq.s32.totalorder %s23, 1
      %p100 = por %p98, %p99
      %p101 = scmp.ne.s32.totalorder %s90, %s91
      %p102 = scmp.eq.s32.totalorder %s23, 0
      %p103 = por %p101, %p102
      %p104 = scmp.ne.s32.totalorder %s90, %s91
      %p105 = scmp.eq.s32.totalorder %s24, 1
      %p106 = por %p104, %p105
      %p108 = scmp.ne.s32.totalorder %s91, %s107
      %p109 = scmp.eq.s32.totalorder %s24, 0
      %p110 = por %p108, %p109
      %s111 = ssub.s32 %s26, %s33
      %p112 = scmp.eq.s32.totalorder %s111, 0
      %s114 = sadd.s32 %s113, 1
      %s115 = scalar_select %p112, %s113, %s114
      %p118 = pneg %p112
      %p119 = scmp.eq.s32.totalorder %s18, 1
      %p120 = por %p118, %p119
      %p121 = scmp.ne.s32.totalorder %s113, %s116
      %p122 = scmp.eq.s32.totalorder %s18, 0
      %p123 = por %p121, %p122
      %p124 = scmp.ne.s32.totalorder %s113, %s116
      %p125 = scmp.eq.s32.totalorder %s23, 1
      %p126 = por %p124, %p125
      %p127 = scmp.ne.s32.totalorder %s116, %s117
      %p128 = scmp.eq.s32.totalorder %s23, 0
      %p129 = por %p127, %p128
      %p130 = scmp.ne.s32.totalorder %s116, %s117
      %p131 = scmp.eq.s32.totalorder %s24, 1
      %p132 = por %p130, %p131
      %p134 = scmp.ne.s32.totalorder %s117, %s133
      %p135 = scmp.eq.s32.totalorder %s24, 0
      %p136 = por %p134, %p135
      %s137 = ssub.s32 %s25, %s37
      %s138 = ssub.s32 %s26, %s33
      %s139 = sor.u32 %s137, %s138
      %p140 = scmp.eq.s32.totalorder %s139, 0
      %s142 = sadd.s32 %s141, 1
      %s143 = scalar_select %p140, %s141, %s142
      %p146 = pneg %p140
      %p147 = scmp.eq.s32.totalorder %s18, 1
      %p148 = por %p146, %p147
      %p149 = scmp.ne.s32.totalorder %s141, %s144
      %p150 = scmp.eq.s32.totalorder %s18, 0
      %p151 = por %p149, %p150
      %p152 = scmp.ne.s32.totalorder %s141, %s144
      %p153 = scmp.eq.s32.totalorder %s23, 1
      %p154 = por %p152, %p153
      %p155 = scmp.ne.s32.totalorder %s144, %s145
      %p156 = scmp.eq.s32.totalorder %s23, 0
      %p157 = por %p155, %p156
      %p158 = scmp.ne.s32.totalorder %s144, %s145
      %p159 = scmp.eq.s32.totalorder %s24, 1
      %p160 = por %p158, %p159
      %p162 = scmp.ne.s32.totalorder %s145, %s161
      %p163 = scmp.eq.s32.totalorder %s24, 0
      %p164 = por %p162, %p163
      %p165 = scmp.le.s32.totalorder 1, %s18
      %p166 = scmp.lt.s32.totalorder %s18, 3
      %p167 = pnand %p165, %p166
      %p168 = pneg %p167
      // Predicated region
      $region9: #{_spectral_norm_conv_forward.1} parent=5 // pred_check
        _
      $region10: #{_spectral_norm_conv_forward.1} parent=5 // pred_check_branch
        %170 = sbr.rel (%p167) target = $region12
      $region11: #{_spectral_norm_conv_forward.1} parent=5 // pred_region
        %s171 = ssub.s32 %s18, 1
        // Predicated region
        $region13: #{_spectral_norm_conv_forward.1} parent=11 // pred_check
          %p172 = pneg %p51
        $region14: #{_spectral_norm_conv_forward.1} parent=11 // pred_check_branch
          %174 = sbr.rel (%p172) target = $region16
        $region15: #{_spectral_norm_conv_forward.1} parent=11 // pred_region
          _
        $region16: #{_spectral_norm_conv_forward.1} parent=11 // pred_fallthru
          _
        // Predicated region
        $region17: #{_spectral_norm_conv_forward.1} parent=11 // pred_check
          %p175 = pneg %p103
        $region18: #{_spectral_norm_conv_forward.1} parent=11 // pred_check_branch
          %177 = sbr.rel (%p175) target = $region20
        $region19: #{_spectral_norm_conv_forward.1} parent=11 // pred_region
          %s179 = ssub.s32 128, 128
          %180 = vsyncadd [#allocation7], %s179
          %s181 = smul.addr %s28, 128
          %s182 = scalar_lea.hbm %s2, %s181
          %s184 = sshll.u32 [#allocation6], 4
          %s185 = int_to_ptr.vmem [resolvable:$true] %s184
          %187 = dma.hbm_to_vmem [thread:$0]  %s182, 128, %s185, [#allocation7]
        $region20: #{_spectral_norm_conv_forward.1} parent=11 // pred_fallthru
          _
        // Predicated region
        $region21: #{_spectral_norm_conv_forward.1} parent=11 // pred_check
          %p188 = pneg %p129
        $region22: #{_spectral_norm_conv_forward.1} parent=11 // pred_check_branch
          %190 = sbr.rel (%p188) target = $region24
        $region23: #{_spectral_norm_conv_forward.1} parent=11 // pred_region
          %s192 = ssub.s32 128, 128
          %193 = vsyncadd [#allocation7], %s192
          %s194 = smul.addr %s28, 128
          %s195 = scalar_lea.hbm %s3, %s194
          %s197 = sshll.u32 [#allocation8], 4
          %s198 = int_to_ptr.vmem [resolvable:$true] %s197
          %200 = dma.hbm_to_vmem [thread:$0]  %s195, 128, %s198, [#allocation7]
        $region24: #{_spectral_norm_conv_forward.1} parent=11 // pred_fallthru
          _
      $region12: #{_spectral_norm_conv_forward.1} parent=5 // pred_fallthru
        _
      %p201 = scmp.lt.s32.totalorder %s18, 2
      // Predicated region
      $region25: #{_spectral_norm_conv_forward.1} parent=5 // pred_check
        %p202 = pneg %p201
      $region26: #{_spectral_norm_conv_forward.1} parent=5 // pred_check_branch
        %204 = sbr.rel (%p202) target = $region28
      $region27: #{_spectral_norm_conv_forward.1} parent=5 // pred_region
        // Predicated region
        $region29: #{_spectral_norm_conv_forward.1} parent=27 // pred_check
          %p205 = pneg %p71
        $region30: #{_spectral_norm_conv_forward.1} parent=27 // pred_check_branch
          %207 = sbr.rel (%p205) target = $region32
        $region31: #{_spectral_norm_conv_forward.1} parent=27 // pred_region
          %s208 = sand.u32 %s61, 1
          %s209 = scalar_lea.sflag [#allocation4], %s208
          %s210 = sand.u32 %s61, 1
          %s211 = smul.addr %s210, 32
          %s212 = scalar_lea.vmem [#allocation3], %s211
          %s214 = ssub.s32 512, 512
          %215 = vsyncadd %s209, %s214
          %s216 = smul.addr %s25, 4
          %s217 = smul.addr %s216, 128
          %s218 = scalar_lea.hbm %s1, %s217
          %s220 = sshll.u32 %s212, 4
          %s221 = int_to_ptr.vmem [resolvable:$true] %s220
          %223 = dma.hbm_to_vmem [thread:$0]  %s218, 512, %s221, %s209
        $region32: #{_spectral_norm_conv_forward.1} parent=27 // pred_fallthru
          _
      $region28: #{_spectral_norm_conv_forward.1} parent=5 // pred_fallthru
        _
      %p224 = scmp.le.s32.totalorder 1, %s18
      %p225 = scmp.lt.s32.totalorder %s18, 3
      %p226 = pnand %p224, %p225
      %p227 = pneg %p226
      // Predicated region
      $region33: #{_spectral_norm_conv_forward.1} parent=5 // pred_check
        _
      $region34: #{_spectral_norm_conv_forward.1} parent=5 // pred_check_branch
        %229 = sbr.rel (%p226) target = $region36
      $region35: #{_spectral_norm_conv_forward.1} parent=5 // pred_region
        %s230 = ssub.s32 %s18, 1
        %s231 = sand.u32 %s64, 1
        %s232 = scalar_lea.sflag [#allocation4], %s231
        %s233 = sand.u32 %s64, 1
        %s234 = smul.addr %s233, 32
        %s235 = scalar_lea.vmem [#allocation3], %s234
        // Predicated region
        $region37: #{_spectral_norm_conv_forward.1} parent=35 // pred_check
          %p236 = pneg %p77
        $region38: #{_spectral_norm_conv_forward.1} parent=35 // pred_check_branch
          %238 = sbr.rel (%p236) target = $region40
        $region39: #{_spectral_norm_conv_forward.1} parent=35 // pred_region
          %239 = dma.done %s232, 512
        $region40: #{_spectral_norm_conv_forward.1} parent=35 // pred_fallthru
          _
        // Predicated region
        $region41: #{_spectral_norm_conv_forward.1} parent=35 // pred_check
          %p240 = pneg %p103
        $region42: #{_spectral_norm_conv_forward.1} parent=35 // pred_check_branch
          %242 = sbr.rel (%p240) target = $region44
        $region43: #{_spectral_norm_conv_forward.1} parent=35 // pred_region
          %243 = dma.done [#allocation7], 128
        $region44: #{_spectral_norm_conv_forward.1} parent=35 // pred_fallthru
          _
        // Predicated region
        $region45: #{_spectral_norm_conv_forward.1} parent=35 // pred_check
          %p244 = pneg %p129
        $region46: #{_spectral_norm_conv_forward.1} parent=35 // pred_check_branch
          %246 = sbr.rel (%p244) target = $region48
        $region47: #{_spectral_norm_conv_forward.1} parent=35 // pred_region
          %247 = dma.done [#allocation7], 128
        $region48: #{_spectral_norm_conv_forward.1} parent=35 // pred_fallthru
          _
        %p248 = pneg %p51
        %p249 = pneg %p48
        %s250 = sand.u32 %s64, 1
        %s251 = scalar_lea.sflag [#allocation4], %s250
        %s252 = sand.u32 %s64, 1
        %s253 = smul.addr %s252, 32
        %s254 = scalar_lea.vmem [#allocation3], %s253
        %p255 = pneg %p77
        %p256 = pneg %p74
        %p257 = pneg %p103
        %p258 = pneg %p100
        %p259 = pneg %p129
        %p260 = pneg %p126
        %p261 = pneg %p157
        %p262 = pneg %p154
        %s263 = sand.u32 %s144, 1
        %s264 = scalar_lea.sflag [#allocation5], %s263
        %s265 = sand.u32 %s144, 1
        %s266 = smul.addr %s265, 24
        %s267 = scalar_lea.vmem [#allocation9], %s266
        %s268 = sld [smem:[#allocation2]]
        %v269 = vstv %s268
        %v270 = vrcp.pop %v269
        %s271 = vtos %v270
        %v272 = vld [vmem:[%s235] sm:$0xff]
        %v273 = vld [vmem:[%s235 + $0x8] sm:$0xff]
        %v274 = vld [vmem:[%s235 + $0x10] sm:$0xff]
        %v275 = vld [vmem:[%s235 + $0x18] sm:$0xff]
        %280 = vrot.lane.b32.xlu0 %v272, 127
        %v281 = vpop.permute.xlu0 %280
        %282 = vrot.lane.b32.xlu0 %v273, 127
        %v283 = vpop.permute.xlu0 %282
        %284 = vrot.lane.b32.xlu0 %v274, 127
        %v285 = vpop.permute.xlu0 %284
        %286 = vrot.lane.b32.xlu0 %v275, 127
        %v287 = vpop.permute.xlu0 %286
        %vm288 = vcmask 1039360
        %v289 = vsel %vm288, %v281, %v283
        %v290 = vsel %vm288, %v283, %v285
        %v291 = vsel %vm288, %v285, %v287
        %295 = vrot.lane.b32.xlu0 %v272, 126
        %v296 = vpop.permute.xlu0 %295
        %297 = vrot.lane.b32.xlu0 %v273, 126
        %v298 = vpop.permute.xlu0 %297
        %299 = vrot.lane.b32.xlu0 %v274, 126
        %v300 = vpop.permute.xlu0 %299
        %301 = vrot.lane.b32.xlu0 %v275, 126
        %v302 = vpop.permute.xlu0 %301
        %vm303 = vcmask 1031168
        %v304 = vsel %vm303, %v296, %v298
        %v305 = vsel %vm303, %v298, %v300
        %v306 = vsel %vm303, %v300, %v302
        %310 = vrot.lane.b32.xlu0 %v272, 110
        %v311 = vpop.permute.xlu0 %310
        %312 = vrot.lane.b32.xlu0 %v273, 110
        %v313 = vpop.permute.xlu0 %312
        %314 = vrot.lane.b32.xlu0 %v274, 110
        %v315 = vpop.permute.xlu0 %314
        %316 = vrot.lane.b32.xlu0 %v275, 110
        %v317 = vpop.permute.xlu0 %316
        %vm318 = vcmask 900096
        %v319 = vsel %vm318, %v311, %v313
        %v320 = vsel %vm318, %v313, %v315
        %v321 = vsel %vm318, %v315, %v317
        %325 = vrot.lane.b32.xlu0 %v272, 109
        %v326 = vpop.permute.xlu0 %325
        %327 = vrot.lane.b32.xlu0 %v273, 109
        %v328 = vpop.permute.xlu0 %327
        %329 = vrot.lane.b32.xlu0 %v274, 109
        %v330 = vpop.permute.xlu0 %329
        %331 = vrot.lane.b32.xlu0 %v275, 109
        %v332 = vpop.permute.xlu0 %331
        %vm333 = vcmask 891904
        %v334 = vsel %vm333, %v326, %v328
        %v335 = vsel %vm333, %v328, %v330
        %v336 = vsel %vm333, %v330, %v332
        %340 = vrot.lane.b32.xlu0 %v272, 108
        %v341 = vpop.permute.xlu0 %340
        %342 = vrot.lane.b32.xlu0 %v273, 108
        %v343 = vpop.permute.xlu0 %342
        %344 = vrot.lane.b32.xlu0 %v274, 108
        %v345 = vpop.permute.xlu0 %344
        %346 = vrot.lane.b32.xlu0 %v275, 108
        %v347 = vpop.permute.xlu0 %346
        %vm348 = vcmask 883712
        %v349 = vsel %vm348, %v341, %v343
        %v350 = vsel %vm348, %v343, %v345
        %v351 = vsel %vm348, %v345, %v347
        %355 = vrot.lane.b32.xlu0 %v272, 92
        %v356 = vpop.permute.xlu0 %355
        %357 = vrot.lane.b32.xlu0 %v273, 92
        %v358 = vpop.permute.xlu0 %357
        %359 = vrot.lane.b32.xlu0 %v274, 92
        %v360 = vpop.permute.xlu0 %359
        %361 = vrot.lane.b32.xlu0 %v275, 92
        %v362 = vpop.permute.xlu0 %361
        %vm363 = vcmask 752640
        %v364 = vsel %vm363, %v356, %v358
        %v365 = vsel %vm363, %v358, %v360
        %v366 = vsel %vm363, %v360, %v362
        %370 = vrot.lane.b32.xlu0 %v272, 91
        %v371 = vpop.permute.xlu0 %370
        %372 = vrot.lane.b32.xlu0 %v273, 91
        %v373 = vpop.permute.xlu0 %372
        %374 = vrot.lane.b32.xlu0 %v274, 91
        %v375 = vpop.permute.xlu0 %374
        %376 = vrot.lane.b32.xlu0 %v275, 91
        %v377 = vpop.permute.xlu0 %376
        %vm378 = vcmask 744448
        %v379 = vsel %vm378, %v371, %v373
        %v380 = vsel %vm378, %v373, %v375
        %v381 = vsel %vm378, %v375, %v377
        %385 = vrot.lane.b32.xlu0 %v272, 90
        %v386 = vpop.permute.xlu0 %385
        %387 = vrot.lane.b32.xlu0 %v273, 90
        %v388 = vpop.permute.xlu0 %387
        %389 = vrot.lane.b32.xlu0 %v274, 90
        %v390 = vpop.permute.xlu0 %389
        %391 = vrot.lane.b32.xlu0 %v275, 90
        %v392 = vpop.permute.xlu0 %391
        %vm393 = vcmask 736256
        %v394 = vsel %vm393, %v386, %v388
        %v395 = vsel %vm393, %v388, %v390
        %v396 = vsel %vm393, %v390, %v392
        %v400 = vld [vmem:[#allocation6] sm:$0xff]
        %vm401 = vcmask 588800
        %v403 = vsel %vm401, %v400, 0
        %405 = vmatprep.subr.mxu0 %v273
        %406 = vmatpush1.msra.mxu0 %v272
        %407 = vmatprep.subr.mxu0 %v290
        %408 = vmatpush1.msra.mxu0 %v289
        %409 = vmatprep.subr.mxu0 %v305
        %410 = vmatpush1.msra.mxu0 %v304
        %411 = vmatprep.subr.mxu0 %v320
        %412 = vmatpush1.msra.mxu0 %v319
        %413 = vmatprep.subr.mxu0 %v335
        %414 = vmatpush1.msra.mxu0 %v334
        %415 = vmatprep.subr.mxu0 %v350
        %416 = vmatpush1.msra.mxu0 %v349
        %417 = vmatprep.subr.mxu0 %v365
        %418 = vmatpush1.msra.mxu0 %v364
        %419 = vmatprep.subr.mxu0 %v380
        %420 = vmatpush1.msra.mxu0 %v379
        %421 = vmatprep.subr.mxu0 %v395
        %422 = vmatpush1.msra.mxu0 %v394
        %423 = vmatprep.subr.mxu0 0.0
        %424 = vmatpush1.msra.mxu0 0.0
        %425 = vmatprep.subr.mxu0 0.0
        %426 = vmatpush1.msra.mxu0 0.0
        %427 = vmatprep.subr.mxu0 0.0
        %428 = vmatpush1.msra.mxu0 0.0
        %429 = vmatprep.subr.mxu0 0.0
        %430 = vmatpush1.msra.mxu0 0.0
        %431 = vmatprep.subr.mxu0 0.0
        %432 = vmatpush1.msra.mxu0 0.0
        %433 = vmatprep.subr.mxu0 0.0
        %434 = vmatpush1.msra.mxu0 0.0
        %435 = vmatprep.subr.mxu0 0.0
        %436 = vmatpush1.msra.mxu0 0.0
        %437 = vmatprep.subr.mxu0 0.0
        %438 = vmatpush1.msra.mxu0 0.0
        %439 = vmatprep.subr.mxu0 0.0
        %440 = vmatpush1.msra.mxu0 0.0
        %441 = vmatprep.subr.mxu0 0.0
        %442 = vmatpush1.msra.mxu0 0.0
        %443 = vmatprep.subr.mxu0 0.0
        %444 = vmatpush1.msra.mxu0 0.0
        %445 = vmatprep.subr.mxu0 0.0
        %446 = vmatpush1.msra.mxu0 0.0
        %447 = vmatprep.subr.mxu0 0.0
        %448 = vmatpush1.msra.mxu0 0.0
        %449 = vmatprep.subr.mxu0 0.0
        %450 = vmatpush1.msra.mxu0 0.0
        %451 = vmatprep.subr.mxu0 0.0
        %452 = vmatpush1.msra.mxu0 0.0
        %453 = vmatprep.subr.mxu0 0.0
        %454 = vmatpush1.msra.mxu0 0.0
        %455 = vmatprep.subr.mxu0 0.0
        %456 = vmatpush1.msra.mxu0 0.0
        %457 = vmatprep.subr.mxu0 0.0
        %458 = vmatpush1.msra.mxu0 0.0
        %459 = vmatprep.subr.mxu0 0.0
        %460 = vmatpush1.msra.mxu0 0.0
        %461 = vmatprep.subr.mxu0 0.0
        %462 = vmatpush1.msra.mxu0 0.0
        %463 = vmatprep.subr.mxu0 0.0
        %464 = vmatpush1.msra.mxu0 0.0
        %465 = vmatprep.subr.mxu0 0.0
        %466 = vmatpush1.msra.mxu0 0.0
        %467 = vmatprep.subr.mxu0 0.0
        %468 = vmatpush1.msra.mxu0 0.0
        %469 = vmatprep.mubr.f32.mxu0 0.0
        %470 = vmatmul.mubr.f32.gmra.mrb[0].mxu0 %v403
        %v471 = vpop.f32.mrb[0].mxu0
        %v472 = vadd.f32 0.0, %v471
        %v473 = vpop.f32.mrb[0].mxu0
        %v474 = vadd.f32 0.0, %v473
        %475 = vdwg.mxu0
        %476 = vmatprep.subr.mxu0 0.0
        %477 = vmatpush1.msra.mxu0 %v274
        %478 = vmatprep.subr.mxu0 0.0
        %479 = vmatpush1.msra.mxu0 %v291
        %480 = vmatprep.subr.mxu0 0.0
        %481 = vmatpush1.msra.mxu0 %v306
        %482 = vmatprep.subr.mxu0 0.0
        %483 = vmatpush1.msra.mxu0 %v321
        %484 = vmatprep.subr.mxu0 0.0
        %485 = vmatpush1.msra.mxu0 %v336
        %486 = vmatprep.subr.mxu0 0.0
        %487 = vmatpush1.msra.mxu0 %v351
        %488 = vmatprep.subr.mxu0 0.0
        %489 = vmatpush1.msra.mxu0 %v366
        %490 = vmatprep.subr.mxu0 0.0
        %491 = vmatpush1.msra.mxu0 %v381
        %492 = vmatprep.subr.mxu0 0.0
        %493 = vmatpush1.msra.mxu0 %v396
        %494 = vmatprep.subr.mxu0 0.0
        %495 = vmatpush1.msra.mxu0 0.0
        %496 = vmatprep.subr.mxu0 0.0
        %497 = vmatpush1.msra.mxu0 0.0
        %498 = vmatprep.subr.mxu0 0.0
        %499 = vmatpush1.msra.mxu0 0.0
        %500 = vmatprep.subr.mxu0 0.0
        %501 = vmatpush1.msra.mxu0 0.0
        %502 = vmatprep.subr.mxu0 0.0
        %503 = vmatpush1.msra.mxu0 0.0
        %504 = vmatprep.subr.mxu0 0.0
        %505 = vmatpush1.msra.mxu0 0.0
        %506 = vmatprep.subr.mxu0 0.0
        %507 = vmatpush1.msra.mxu0 0.0
        %508 = vmatprep.subr.mxu0 0.0
        %509 = vmatpush1.msra.mxu0 0.0
        %510 = vmatprep.subr.mxu0 0.0
        %511 = vmatpush1.msra.mxu0 0.0
        %512 = vmatprep.subr.mxu0 0.0
        %513 = vmatpush1.msra.mxu0 0.0
        %514 = vmatprep.subr.mxu0 0.0
        %515 = vmatpush1.msra.mxu0 0.0
        %516 = vmatprep.subr.mxu0 0.0
        %517 = vmatpush1.msra.mxu0 0.0
        %518 = vmatprep.subr.mxu0 0.0
        %519 = vmatpush1.msra.mxu0 0.0
        %520 = vmatprep.subr.mxu0 0.0
        %521 = vmatpush1.msra.mxu0 0.0
        %522 = vmatprep.subr.mxu0 0.0
        %523 = vmatpush1.msra.mxu0 0.0
        %524 = vmatprep.subr.mxu0 0.0
        %525 = vmatpush1.msra.mxu0 0.0
        %526 = vmatprep.subr.mxu0 0.0
        %527 = vmatpush1.msra.mxu0 0.0
        %528 = vmatprep.subr.mxu0 0.0
        %529 = vmatpush1.msra.mxu0 0.0
        %530 = vmatprep.subr.mxu0 0.0
        %531 = vmatpush1.msra.mxu0 0.0
        %532 = vmatprep.subr.mxu0 0.0
        %533 = vmatpush1.msra.mxu0 0.0
        %534 = vmatprep.subr.mxu0 0.0
        %535 = vmatpush1.msra.mxu0 0.0
        %536 = vmatprep.subr.mxu0 0.0
        %537 = vmatpush1.msra.mxu0 0.0
        %538 = vmatprep.subr.mxu0 0.0
        %539 = vmatpush1.msra.mxu0 0.0
        %540 = vmatprep.mubr.f32.mxu0 0.0
        %541 = vmatmul.mubr.f32.gmra.mrb[0].mxu0 %v403
        %v542 = vpop.f32.mrb[0].mxu0
        %v543 = vadd.f32 0.0, %v542
        %v544 = vpop.f32.mrb[0].mxu0
        %545 = vdwg.mxu0
        %v546 = vstv %s271
        %v547 = vmul.f32 %v472, %v546
        %v548 = vmul.f32 %v474, %v546
        %v549 = vmul.f32 %v543, %v546
        %v550 = vld [vmem:[#allocation8] sm:$0xff]
        %552 = vset.pattern.permute.xlu0 0
        %553 = vperm.xlu0 %552, %v550
        %v554 = vpop.permute.xlu0 %553
        %v556 = vadd.f32 %v547, %v554
        %v557 = vadd.f32 %v548, %v554
        %v558 = vadd.f32 %v549, %v554
        %559 = vst [vmem:[%s267] sm:$0xff] %v556
        %560 = vst [vmem:[%s267 + $0x8] sm:$0xff] %v557
        %561 = vst [vmem:[%s267 + $0x10] sm:$0xff] %v558
        %s562 = sand.u32 %s144, 1
        %s563 = scalar_lea.sflag [#allocation5], %s562
        %s564 = sand.u32 %s144, 1
        %s565 = smul.addr %s564, 24
        %s566 = scalar_lea.vmem [#allocation9], %s565
        // Predicated region
        $region49: #{_spectral_norm_conv_forward.1} parent=35 // pred_check
          %p567 = pneg %p154
        $region50: #{_spectral_norm_conv_forward.1} parent=35 // pred_check_branch
          %569 = sbr.rel (%p567) target = $region52
        $region51: #{_spectral_norm_conv_forward.1} parent=35 // pred_region
          %s571 = ssub.s32 384, 384
          %572 = vsyncadd %s563, %s571
          %s573 = smul.addr %s28, 3
          %s574 = smul.addr %s27, 3
          %s575 = sadd.s32 %s573, %s574
          %s576 = smul.addr %s575, 128
          %s577 = scalar_lea.hbm %s4, %s576
          %s579 = sshll.u32 %s566, 4
          %s580 = int_to_ptr.vmem [resolvable:$true] %s579
          %582 = dma.vmem_to_hbm [thread:$0]  %s580, 384, %s577, %s563
        $region52: #{_spectral_norm_conv_forward.1} parent=35 // pred_fallthru
          _
      $region36: #{_spectral_norm_conv_forward.1} parent=5 // pred_fallthru
        _
      %p583 = scmp.le.s32.totalorder 2, %s18
      // Predicated region
      $region53: #{_spectral_norm_conv_forward.1} parent=5 // pred_check
        %p584 = pneg %p583
      $region54: #{_spectral_norm_conv_forward.1} parent=5 // pred_check_branch
        %586 = sbr.rel (%p584) target = $region56
      $region55: #{_spectral_norm_conv_forward.1} parent=5 // pred_region
        %s587 = ssub.s32 %s18, 2
        // Predicated region
        $region57: #{_spectral_norm_conv_forward.1} parent=55 // pred_check
          %p588 = pneg %p160
        $region58: #{_spectral_norm_conv_forward.1} parent=55 // pred_check_branch
          %590 = sbr.rel (%p588) target = $region60
        $region59: #{_spectral_norm_conv_forward.1} parent=55 // pred_region
          %s591 = sand.u32 %s145, 1
          %s592 = scalar_lea.sflag [#allocation5], %s591
          %s593 = sand.u32 %s145, 1
          %s594 = smul.addr %s593, 24
          %s595 = scalar_lea.vmem [#allocation9], %s594
          %596 = dma.done %s592, 384
        $region60: #{_spectral_norm_conv_forward.1} parent=55 // pred_fallthru
          _
      $region56: #{_spectral_norm_conv_forward.1} parent=5 // pred_fallthru
        _
    $region6: #{_spectral_norm_conv_forward.1} parent=1 // loop_footer
      %s22 = sadd.s32 1, %s18
    $region7: #{_spectral_norm_conv_forward.1} parent=1 // loop_footer_branch
      %17 = sbr.rel target = $region3
    $region8: #{_spectral_norm_conv_forward.1} parent=1 // loop_exit
      _
    %597 = vsyncpa [#allocation4], 1
    %s598 = scalar_lea.sflag [#allocation4], 1
    %599 = vsyncpa %s598, 1
    %600 = vsyncpa [#allocation7], 1
    %601 = vsyncpa [#allocation5], 1
    %s602 = scalar_lea.sflag [#allocation5], 1
    %603 = vsyncpa %s602, 1

</llo_original>
